<compile_context>
chip_gen: v7x
topology: tpu7x:2x2x1
jax: 0.10.0
libtpu: 0.0.40
codegen_flags: <defaults>
</compile_context>

<pallas_src>
import jax
import jax.numpy as jnp
from jax.experimental import pallas as pl
from jax.experimental.pallas import tpu as pltpu


def _round_up(x, m):
    return ((x + m - 1) // m) * m


def _spiral_deblock_kernel(g_ref, y_ref, b_ref, o_ref, acc_ref):
    """One (n_up-tile u, batch-tile b, k-tile kk) grid step.

    g_ref:   (tile_u, tile_k)   fused Pool+gather matrix tile (compute dtype)
    y_ref:   (tile_k, n_tile)   precomputed x @ W slab for this batch tile
    b_ref:   (1, n_tile)        bias, replicated per fused batch element (f32)
    o_ref:   (tile_u, n_tile)   output tile (compute dtype)
    acc_ref: (tile_u, n_tile)   f32 accumulator (persists across k tiles)
    """
    kk = pl.program_id(2)

    @pl.when(kk == 0)
    def _():
        acc_ref[...] = jnp.zeros_like(acc_ref)

    acc_ref[...] += jnp.dot(g_ref[...], y_ref[...],
                            preferred_element_type=jnp.float32)

    @pl.when(kk == pl.num_programs(2) - 1)
    def _():
        z = acc_ref[...] + b_ref[...]
        # ELU(alpha=1.0)
        o_ref[...] = jnp.where(z > 0.0, z,
                               jnp.exp(jnp.minimum(z, 0.0)) - 1.0
                               ).astype(o_ref.dtype)


def _vmem_capacity_bytes():
    try:
        info = pltpu.get_tpu_info()
        return int(getattr(info, "vmem_capacity_bytes", 64 * 2**20))
    except Exception:
        return 64 * 2**20  # conservative (v7x per-TensorCore)


def _plan(n_up, bs, k, c_out_pad, compute_dtype):
    """Pick tiles / padding / VMEM budget (generation-aware)."""
    bytes_per = jnp.dtype(compute_dtype).itemsize

    # Batch fusion along the MXU N axis: target N ~ 256 lanes.
    b_tile = max(1, min(bs, 256 // c_out_pad))
    n_tile = b_tile * c_out_pad
    bs_pad = _round_up(bs, b_tile)

    # Contraction tiling only when seq*n_in is large (keeps the Y slab small).
    if k <= 4096:
        tile_k, k_pad = k, k
    else:
        tile_k = 2048
        k_pad = _round_up(k, tile_k)

    # VMEM budget: ~48 MiB on 64 MiB parts (v7x), ~96 MiB on 128 MiB (v5e/v6e).
    vmem_cap = _vmem_capacity_bytes()
    vmem_limit = max(32 * 2**20, min(vmem_cap * 3 // 4, 100 * 2**20))
    budget = int(vmem_limit * 0.8)  # headroom for compiler-internal scratch

    out_bytes = bytes_per  # output written in compute dtype
    fixed = 2 * tile_k * n_tile * bytes_per + 2 * n_tile * 4          # Y + bias
    per_row = 2 * tile_k * bytes_per + 2 * n_tile * out_bytes + n_tile * 4
    tile_u_max = max(16, (budget - fixed) // per_row)

    n_up_16 = _round_up(n_up, 16)
    tile_u = min(tile_u_max, 4096, n_up_16)
    if tile_u >= 256:
        tile_u = (tile_u // 256) * 256       # big tiles: multiple of 256
    else:
        tile_u = max(16, (tile_u // 16) * 16)  # bf16 sublane packing: mult of 16
    n_up_pad = _round_up(n_up, tile_u)

    return b_tile, n_tile, bs_pad, tile_k, k_pad, tile_u, n_up_pad, int(vmem_limit)


def make_spiral_deblock(up_transform_dense, indices, weight, bias, *,
                        batch_size, compute_dtype=jnp.bfloat16):
    """Build the SpiralDeblock forward once (constants cached), return forward(x).

    up_transform_dense: (n_up, n_in) dense version of the sparse up_transform
    indices:            (n_up, seq) int32 spiral indices
    weight:             (c_out, seq*c_in) torch nn.Linear layout
    bias:               (c_out,)
    forward(x):         x (batch_size, n_in, c_in) -> (batch_size, n_up, c_out)
    """
    n_up, n_in = up_transform_dense.shape
    seq = indices.shape[1]
    c_out = weight.shape[0]
    c_in = weight.shape[1] // seq
    assert weight.shape[1] == seq * c_in
    k = seq * n_in
    c_out_pad = max(128, _round_up(c_out, 128))
    bytes_per = jnp.dtype(compute_dtype).itemsize

    (b_tile, n_tile, bs_pad, tile_k, k_pad,
     tile_u, n_up_pad, vmem_limit) = _plan(n_up, batch_size, k, c_out_pad,
                                           compute_dtype)

    # ---- model constants, built ONCE ------------------------------------
    # G[u, s*n_in + j] = T[idx[u, s], j]  (Pool + spiral gather fused).
    g_cat = jnp.take(up_transform_dense, indices, axis=0).reshape(n_up, k)
    g_cat = jnp.pad(g_cat, ((0, n_up_pad - n_up), (0, k_pad - k)))
    g_cat = g_cat.astype(compute_dtype)
    # TODO(synk): narrow G further (fp8-e4m3 on v7x, int8 + per-tile scale on
    # v5e/v6e) to halve the dominant HBM stream on bandwidth-bound shapes.

    # W_stack[s, c, o] = weight[o, s*c_in + c], zero-padded along o.
    w_pad = jnp.pad(weight, ((0, c_out_pad - c_out), (0, 0)))
    w_stack = jnp.transpose(w_pad.reshape(c_out_pad, seq, c_in), (1, 2, 0))
    w_stack = w_stack.astype(compute_dtype)

    bias_big = jnp.tile(jnp.pad(bias, (0, c_out_pad - c_out)), (b_tile,))
    bias_big = bias_big.reshape(1, n_tile).astype(jnp.float32)

    grid = (n_up_pad // tile_u, bs_pad // b_tile, k_pad // tile_k)
    n_u_tiles, n_b_tiles, n_k_tiles = grid

    cost = pl.CostEstimate(
        flops=int(2 * n_up_pad * k_pad * bs_pad * c_out_pad),
        transcendentals=int(n_up_pad * bs_pad * c_out_pad),
        bytes_accessed=int(
            (n_b_tiles if n_k_tiles > 1 else 1) * n_up_pad * k_pad * bytes_per  # G
            + n_u_tiles * k_pad * bs_pad * c_out_pad * bytes_per                # Y
            + n_up_pad * bs_pad * c_out_pad * bytes_per))                       # out

    grid_spec = pltpu.PrefetchScalarGridSpec(
        num_scalar_prefetch=0,
        grid=grid,
        in_specs=[
            # G: index depends only on (u, kk) -> resident across the inner
            # batch axis (streamed exactly once when the batch fits one tile).
            # On v5e add pipeline_mode=pl.Buffered(3) if this DMA is exposed.
            pl.BlockSpec((tile_u, tile_k), lambda u, b, kk: (u, kk)),
            # Y slab (precomputed x @ W): depends only on (kk, b).
            pl.BlockSpec((tile_k, n_tile), lambda u, b, kk: (kk, b)),
            # bias (replicated across the fused batch), resident.
            pl.BlockSpec((1, n_tile), lambda u, b, kk: (0, 0)),
        ],
        out_specs=pl.BlockSpec((tile_u, n_tile), lambda u, b, kk: (u, b)),
        scratch_shapes=[pltpu.VMEM((tile_u, n_tile), jnp.float32)],
    )

    call = pl.pallas_call(
        _spiral_deblock_kernel,
        out_shape=jax.ShapeDtypeStruct((n_up_pad, bs_pad * c_out_pad),
                                       compute_dtype),
        grid_spec=grid_spec,
        compiler_params=pltpu.CompilerParams(
            dimension_semantics=("parallel", "parallel", "arbitrary"),
            vmem_limit_bytes=vmem_limit),
        cost_estimate=cost,
    )

    @jax.jit
    def forward(x):
        bs, n_in_x, c_in_x = x.shape
        assert (bs, n_in_x, c_in_x) == (batch_size, n_in, c_in), "shape mismatch"
        # Per-batch-only work hoisted out of the kernel:
        # Y[s*n_in + j, b*c_out_pad + o] = sum_c x[b, j, c] * weight[o, s*c_in + c]
        y = jnp.einsum('bjc,sco->sjbo', x.astype(compute_dtype), w_stack,
                       preferred_element_type=jnp.float32)
        y = y.astype(compute_dtype).reshape(k, bs, c_out_pad)
        y = jnp.pad(y, ((0, k_pad - k), (0, bs_pad - bs), (0, 0)))
        y = y.reshape(k_pad, bs_pad * c_out_pad)

        out = call(g_cat, y, bias_big)              # (n_up_pad, bs_pad*c_out_pad)
        out = out.reshape(n_up_pad, bs_pad, c_out_pad)[:n_up, :bs, :c_out]
        # NOTE: padded rows/columns hold ELU(bias); sliced off here. If the
        # consumer can take the padded bf16 layout directly, drop this slice.
        return jnp.transpose(out, (1, 0, 2)).astype(x.dtype)

    return forward


def spiral_deblock_forward(x, up_transform_dense, indices, weight, bias,
                           *, compute_dtype=jnp.bfloat16):
    """One-shot convenience wrapper. For repeated calls, build the forward once
    with make_spiral_deblock (G / weight-stack construction is then amortized)."""
    fwd = make_spiral_deblock(up_transform_dense, indices, weight, bias,
                              batch_size=x.shape[0], compute_dtype=compute_dtype)
    return fwd(x)


def _reference(x, t_dense, indices, weight, bias):
    """Pure-JAX replica of the PyTorch forward (Pool -> SpiralConv -> ELU)."""
    bs = x.shape[0]
    n_up, seq = indices.shape
    pooled = jnp.einsum('ij,bjc->bic', t_dense, x)                  # Pool
    g = pooled[:, indices.reshape(-1), :].reshape(bs, n_up, -1)     # spiral gather
    y = g @ weight.T + bias                                         # Linear
    return jnp.where(y > 0, y, jnp.exp(jnp.minimum(y, 0.0)) - 1.0)  # ELU


if __name__ == "__main__":
    key = jax.random.PRNGKey(0)
    k1, k2, k3, k4, k5 = jax.random.split(key, 5)

    bs, n_in, n_up, c_in, c_out, seq = 2, 16, 32, 8, 16, 4

    # Input features.
    x = jax.random.normal(k1, (bs, n_in, c_in), dtype=jnp.float32)

    # Spiral indices: (n_up, seq), each row's first entry is the node itself.
    indices = jax.random.randint(k2, (n_up, seq), 0, n_up, dtype=jnp.int32)
    indices = indices.at[:, 0].set(jnp.arange(n_up, dtype=jnp.int32))

    # Synthetic sparse up_transform (COO), densified — Pool's
    # index_select * value + scatter_add is exactly this dense matmul.
    nnz_per_row = 2
    rows = jnp.repeat(jnp.arange(n_up, dtype=jnp.int32), nnz_per_row)
    cols = jax.random.randint(k3, (n_up * nnz_per_row,), 0, n_in, dtype=jnp.int32)
    vals = jax.random.uniform(k4, (n_up * nnz_per_row,), dtype=jnp.float32)
    up_transform_dense = jnp.zeros((n_up, n_in), jnp.float32).at[rows, cols].add(vals)

    # SpiralConv Linear params: xavier_uniform weight, zero bias.
    fan_in, fan_out = seq * c_in, c_out
    bound = (6.0 / (fan_in + fan_out)) ** 0.5
    weight = jax.random.uniform(k5, (c_out, fan_in), jnp.float32, -bound, bound)
    bias = jnp.zeros((c_out,), jnp.float32)

    # Build once (constants cached), call per-forward.
    fwd = make_spiral_deblock(up_transform_dense, indices, weight, bias,
                              batch_size=bs)
    out = jax.block_until_ready(fwd(x))

    # Reference with the same bf16 input quantization as the kernel (remaining
    # difference is bf16 rounding of the Y intermediate / bf16 output store +
    # f32 accumulation order), so a tight-ish tolerance is safe.
    def _q(a):
        return a.astype(jnp.bfloat16).astype(jnp.float32)

    ref = _reference(_q(x), _q(up_transform_dense), indices, _q(weight), bias)
    assert out.shape == (bs, n_up, c_out)
    assert jnp.allclose(out, ref, atol=2e-2, rtol=2e-2), "mismatch vs reference"

    print("KERNEL_OK")
</pallas_src>

<mosaic_0001>
module attributes {stable_mosaic.version = 11 : i64} {
  func.func @_spiral_deblock_kernel(%arg0: i32, %arg1: i32, %arg2: i32, %arg3: memref<32x64xbf16, #tpu.memory_space<vmem>>, %arg4: memref<64x256xbf16, #tpu.memory_space<vmem>>, %arg5: memref<1x256xf32, #tpu.memory_space<vmem>>, %arg6: memref<32x256xbf16, #tpu.memory_space<vmem>>, %arg7: memref<32x256xf32, #tpu.memory_space<vmem>>) attributes {dimension_semantics = [#tpu.dimension_semantics<parallel>, #tpu.dimension_semantics<parallel>, #tpu.dimension_semantics<arbitrary>], iteration_bounds = array<i64: 1, 1, 1>, scalar_prefetch = 0 : i64, scratch_operands = 1 : i64, tpu.core_type = #tpu.core_type<tc>, window_params = [{transform_indices = @transform_0, window_bounds = array<i64: 32, 64>}, {transform_indices = @transform_1, window_bounds = array<i64: 64, 256>}, {pipeline_mode = #tpu.pipeline_mode<synchronous>, transform_indices = @transform_2, window_bounds = array<i64: 1, 256>}, {transform_indices = @transform_3, window_bounds = array<i64: 32, 256>}]} {
    %c0_i32 = arith.constant 0 : i32
    %0 = arith.cmpi eq, %arg2, %c0_i32 : i32
    %1 = arith.extui %0 : i1 to i32
    %c0_i32_0 = arith.constant 0 : i32
    %2 = arith.cmpi ne, %1, %c0_i32_0 : i32
    scf.if %2 {
      %cst_10 = arith.constant 0.000000e+00 : f32
      %12 = vector.broadcast %cst_10 : f32 to vector<32x256xf32>
      %c0_11 = arith.constant 0 : index
      %c0_12 = arith.constant 0 : index
      %13 = vector.load %arg7[%c0_11, %c0_12] : memref<32x256xf32, #tpu.memory_space<vmem>>, vector<32x256xf32>
      tpu.vector_store %arg7[%c0_11, %c0_12], %12 {strides = array<i32>} : memref<32x256xf32, #tpu.memory_space<vmem>>, vector<32x256xf32>,
    } else {
    }
    %c0 = arith.constant 0 : index
    %c0_1 = arith.constant 0 : index
    %3 = vector.load %arg7[%c0, %c0_1] : memref<32x256xf32, #tpu.memory_space<vmem>>, vector<32x256xf32>
    %c0_2 = arith.constant 0 : index
    %c0_3 = arith.constant 0 : index
    %4 = vector.load %arg3[%c0_2, %c0_3] : memref<32x64xbf16, #tpu.memory_space<vmem>>, vector<32x64xbf16>
    %c0_4 = arith.constant 0 : index
    %c0_5 = arith.constant 0 : index
    %5 = vector.load %arg4[%c0_4, %c0_5] : memref<64x256xbf16, #tpu.memory_space<vmem>>, vector<64x256xbf16>
    %cst = arith.constant dense<0.000000e+00> : vector<32x256xf32>
    %6 = tpu.matmul %4, %5, %cst {dimension_numbers = #tpu.dot_dimension_numbers<[1], [0], [0], [1], [0, 0, 1, 1], [], []>} : vector<32x64xbf16>, vector<64x256xbf16>, vector<32x256xf32> -> vector<32x256xf32>
    %7 = arith.addf %3, %6 : vector<32x256xf32>
    %c0_6 = arith.constant 0 : index
    %c0_7 = arith.constant 0 : index
    %8 = vector.load %arg7[%c0_6, %c0_7] : memref<32x256xf32, #tpu.memory_space<vmem>>, vector<32x256xf32>
    tpu.vector_store %arg7[%c0_6, %c0_7], %7 {strides = array<i32>} : memref<32x256xf32, #tpu.memory_space<vmem>>, vector<32x256xf32>,
    %c0_i32_8 = arith.constant 0 : i32
    %9 = arith.cmpi eq, %arg2, %c0_i32_8 : i32
    %10 = arith.extui %9 : i1 to i32
    %c0_i32_9 = arith.constant 0 : i32
    %11 = arith.cmpi ne, %10, %c0_i32_9 : i32
    scf.if %11 {
      %c0_10 = arith.constant 0 : index
      %c0_11 = arith.constant 0 : index
      %12 = vector.load %arg7[%c0_10, %c0_11] : memref<32x256xf32, #tpu.memory_space<vmem>>, vector<32x256xf32>
      %c0_12 = arith.constant 0 : index
      %c0_13 = arith.constant 0 : index
      %13 = vector.load %arg5[%c0_12, %c0_13] : memref<1x256xf32, #tpu.memory_space<vmem>>, vector<1x256xf32>
      %14 = vector.broadcast %13 : vector<1x256xf32> to vector<32x256xf32>
      %15 = arith.addf %12, %14 : vector<32x256xf32>
      %cst_14 = arith.constant 0.000000e+00 : f32
      %16 = vector.broadcast %cst_14 : f32 to vector<32x256xf32>
      %17 = arith.cmpf ogt, %15, %16 : vector<32x256xf32>
      %cst_15 = arith.constant 0.000000e+00 : f32
      %18 = vector.broadcast %cst_15 : f32 to vector<32x256xf32>
      %19 = arith.minimumf %15, %18 : vector<32x256xf32>
      %20 = math.exp %19 : vector<32x256xf32>
      %cst_16 = arith.constant 1.000000e+00 : f32
      %21 = vector.broadcast %cst_16 : f32 to vector<32x256xf32>
      %22 = arith.subf %20, %21 : vector<32x256xf32>
      %23 = arith.select %17, %15, %22 : vector<32x256xi1>, vector<32x256xf32>
      %24 = arith.truncf %23 : vector<32x256xf32> to vector<32x256xbf16>
      %c0_17 = arith.constant 0 : index
      %c0_18 = arith.constant 0 : index
      %25 = vector.load %arg6[%c0_17, %c0_18] : memref<32x256xbf16, #tpu.memory_space<vmem>>, vector<32x256xbf16>
      tpu.vector_store %arg6[%c0_17, %c0_18], %24 {strides = array<i32>} : memref<32x256xbf16, #tpu.memory_space<vmem>>, vector<32x256xbf16>,
    } else {
    }
    return
  }
  func.func @transform_0(%arg0: i32, %arg1: i32, %arg2: i32) -> (i32, i32) {
    %c0_i32 = arith.constant 0 : i32
    return %arg0, %arg2 : i32, i32
  }
  func.func @transform_1(%arg0: i32, %arg1: i32, %arg2: i32) -> (i32, i32) {
    %c0_i32 = arith.constant 0 : i32
    return %arg2, %arg1 : i32, i32
  }
  func.func @transform_2(%arg0: i32, %arg1: i32, %arg2: i32) -> (i32, i32) {
    %c0_i32 = arith.constant 0 : i32
    %c0_i32_0 = arith.constant 0 : i32
    %c0_i32_1 = arith.constant 0 : i32
    return %c0_i32, %c0_i32_0 : i32, i32
  }
  func.func @transform_3(%arg0: i32, %arg1: i32, %arg2: i32) -> (i32, i32) {
    %c0_i32 = arith.constant 0 : i32
    return %arg0, %arg1 : i32, i32
  }
}

</mosaic_0001>

<llo_original>
// kernel: forward.1
$region0: #{forward.1}
  #allocation0 [shape = 'u32[]', space=smem, size = 0x4, offset = 0x4, fixed_abs, tag = 'smem constant byte address 0x4 - core index']
  #allocation1 [shape = 'u32[144,128]{1,0:T(1,128)}', space=vmem, size = 0x12000, scoped, tag = 'internal scratch']
  #allocation2 [shape = 'f32[32,256]{1,0:T(8,128)}', space=vmem, size = 0x8000, scoped, tag = 'scratch operand']
  %s0 = inlined_call_operand.vmem [shape: bf16[32,64], index: 0, kind: input, shape index: {}]
  %s1 = inlined_call_operand.vmem [shape: bf16[64,256], index: 1, kind: input, shape index: {}]
  %s2 = inlined_call_operand.vmem [shape: f32[1,256], index: 2, kind: input, shape index: {}]
  %s3 = inlined_call_operand.vmem [shape: bf16[32,256], index: 3, kind: output, shape index: {}]
  %s4 = sld [smem:[#allocation0]]
  $region30: #{forward.1} parent=0
    _
  %s6 = ssub.s32 1, %s4
  %s7 = scalar_select 0, %s6, %s4
  // Predicated region
  $region2: #{forward.1} parent=0 // pred_check
    _
  $region3: #{forward.1} parent=0 // pred_check_branch
    %9 = sbr.rel (0) target = $region5
  $region4: #{forward.1} parent=0 // pred_region
    _
  $region5: #{forward.1} parent=0 // pred_fallthru
    _
  // Predicated region
  $region6: #{forward.1} parent=0 // pred_check
    _
  $region7: #{forward.1} parent=0 // pred_check_branch
    %11 = sbr.rel (0) target = $region9
  $region8: #{forward.1} parent=0 // pred_region
    _
  $region9: #{forward.1} parent=0 // pred_fallthru
    _
  // Predicated region
  $region10: #{forward.1} parent=0 // pred_check
    _
  $region11: #{forward.1} parent=0 // pred_check_branch
    %13 = sbr.rel (0) target = $region13
  $region12: #{forward.1} parent=0 // pred_region
    _
  $region13: #{forward.1} parent=0 // pred_fallthru
    _
  %p15 = scmp.eq.s32.totalorder 0, 0
  // Predicated region
  $region14: #{forward.1} parent=0 // pred_check
    %p16 = pneg %p15
  $region15: #{forward.1} parent=0 // pred_check_branch
    %18 = sbr.rel (%p16) target = $region17
  $region16: #{forward.1} parent=0 // pred_region
    %19 = vst [vmem:[#allocation2] sm:$0xff] 0.0
    %20 = vst [vmem:[#allocation2 + $0x8] sm:$0xff] 0.0
    %21 = vst [vmem:[#allocation2 + $0x10] sm:$0xff] 0.0
    %22 = vst [vmem:[#allocation2 + $0x18] sm:$0xff] 0.0
    %23 = vst [vmem:[#allocation2 + $0x20] sm:$0xff] 0.0
    %24 = vst [vmem:[#allocation2 + $0x28] sm:$0xff] 0.0
    %25 = vst [vmem:[#allocation2 + $0x30] sm:$0xff] 0.0
    %26 = vst [vmem:[#allocation2 + $0x38] sm:$0xff] 0.0
  $region17: #{forward.1} parent=0 // pred_fallthru
    _
  %v27 = vld [vmem:[#allocation2] sm:$0xff]
  %v28 = vld [vmem:[#allocation2 + $0x8] sm:$0xff]
  %v29 = vld [vmem:[#allocation2 + $0x10] sm:$0xff]
  %v30 = vld [vmem:[#allocation2 + $0x18] sm:$0xff]
  %v31 = vld [vmem:[#allocation2 + $0x20] sm:$0xff]
  %v32 = vld [vmem:[#allocation2 + $0x28] sm:$0xff]
  %v33 = vld [vmem:[#allocation2 + $0x30] sm:$0xff]
  %v34 = vld [vmem:[#allocation2 + $0x38] sm:$0xff]
  %v35 = vld [vmem:[%s0] sm:$0xf]
  %v36 = vld [vmem:[%s0 + $0x4] sm:$0xf]
  %v37 = vld [vmem:[%s0 + $0x8] sm:$0xf]
  %v38 = vld [vmem:[%s0 + $0xc] sm:$0xf]
  %v39 = vld [vmem:[%s1] sm:$0xff]
  %v40 = vld [vmem:[%s1 + $0x8] sm:$0xff]
  %v41 = vld [vmem:[%s1 + $0x10] sm:$0xff]
  %v42 = vld [vmem:[%s1 + $0x18] sm:$0xff]
  %v43 = vld [vmem:[%s1 + $0x20] sm:$0xff]
  %v44 = vld [vmem:[%s1 + $0x28] sm:$0xff]
  %v45 = vld [vmem:[%s1 + $0x30] sm:$0xff]
  %v46 = vld [vmem:[%s1 + $0x38] sm:$0xff]
  %v51 = vunpack.c.l.b16 %v35
  %v52 = vunpack.c.l.b16 %v36
  %v53 = vunpack.c.l.b16 %v37
  %v54 = vunpack.c.l.b16 %v38
  %v55 = vpack.c.b16 %v52, %v51
  %v56 = vpack.c.b16 %v54, %v53
  %v65 = vunpack.c.l.b16 %v39
  %v66 = vunpack.c.h.b16 %v39
  %v67 = vunpack.c.l.b16 %v40
  %v68 = vunpack.c.h.b16 %v40
  %v69 = vunpack.c.l.b16 %v41
  %v70 = vunpack.c.h.b16 %v41
  %v71 = vunpack.c.l.b16 %v42
  %v72 = vunpack.c.h.b16 %v42
  %v73 = vunpack.c.l.b16 %v43
  %v74 = vunpack.c.h.b16 %v43
  %v75 = vunpack.c.l.b16 %v44
  %v76 = vunpack.c.h.b16 %v44
  %v77 = vunpack.c.l.b16 %v45
  %v78 = vunpack.c.h.b16 %v45
  %v79 = vunpack.c.l.b16 %v46
  %v80 = vunpack.c.h.b16 %v46
  %v81 = vpack.c.b16 %v67, %v65
  %v82 = vpack.c.b16 %v68, %v66
  %v83 = vpack.c.b16 %v71, %v69
  %v84 = vpack.c.b16 %v72, %v70
  %v85 = vpack.c.b16 %v75, %v73
  %v86 = vpack.c.b16 %v76, %v74
  %v87 = vpack.c.b16 %v79, %v77
  %v88 = vpack.c.b16 %v80, %v78
  %vm97 = vcmask 523264
  %v99 = vsel %vm97, %v55, 0
  %v102 = vsel %vm97, %v56, 0
  %104 = vmatprep.subr.bf16.mxu0 %v82
  %105 = vmatpush1.bf16.msra.mxu0 %v81
  %106 = vmatprep.subr.bf16.mxu0 %v84
  %107 = vmatpush1.bf16.msra.mxu0 %v83
  %108 = vmatprep.subr.bf16.mxu0 %v86
  %109 = vmatpush1.bf16.msra.mxu0 %v85
  %110 = vmatprep.subr.bf16.mxu0 %v88
  %111 = vmatpush1.bf16.msra.mxu0 %v87
  %112 = vmatprep.subr.bf16.mxu0 0
  %113 = vmatpush1.bf16.msra.mxu0 0
  %114 = vmatprep.subr.bf16.mxu0 0
  %115 = vmatpush1.bf16.msra.mxu0 0
  %116 = vmatprep.subr.bf16.mxu0 0
  %117 = vmatpush1.bf16.msra.mxu0 0
  %118 = vmatprep.subr.bf16.mxu0 0
  %119 = vmatpush1.bf16.msra.mxu0 0
  %120 = vmatprep.subr.bf16.mxu0 0
  %121 = vmatpush1.bf16.msra.mxu0 0
  %122 = vmatprep.subr.bf16.mxu0 0
  %123 = vmatpush1.bf16.msra.mxu0 0
  %124 = vmatprep.subr.bf16.mxu0 0
  %125 = vmatpush1.bf16.msra.mxu0 0
  %126 = vmatprep.subr.bf16.mxu0 0
  %127 = vmatpush1.bf16.msra.mxu0 0
  %128 = vmatprep.subr.bf16.mxu0 0
  %129 = vmatpush1.bf16.msra.mxu0 0
  %130 = vmatprep.subr.bf16.mxu0 0
  %131 = vmatpush1.bf16.msra.mxu0 0
  %132 = vmatprep.subr.bf16.mxu0 0
  %133 = vmatpush1.bf16.msra.mxu0 0
  %134 = vmatprep.subr.bf16.mxu0 0
  %135 = vmatpush1.bf16.msra.mxu0 0
  %136 = vmatprep.mubr.bf16.mxu0 0
  %137 = vmatmul.mubr.bf16.gmra.mrb[0].mxu0 %v99
  %v138 = vpop.f32.mrb[0].mxu0
  %v139 = vadd.f32 0.0, %v138
  %v140 = vpop.f32.mrb[0].mxu0
  %v141 = vadd.f32 0.0, %v140
  %v142 = vpop.f32.mrb[0].mxu0
  %v143 = vadd.f32 0.0, %v142
  %v144 = vpop.f32.mrb[0].mxu0
  %v145 = vadd.f32 0.0, %v144
  %146 = vmatprep.mubr.bf16.mxu0 0
  %147 = vmatmul.mubr.bf16.gmra.mrb[0].mxu0 %v102
  %v148 = vpop.f32.mrb[0].mxu0
  %v149 = vadd.f32 0.0, %v148
  %v150 = vpop.f32.mrb[0].mxu0
  %v151 = vadd.f32 0.0, %v150
  %v152 = vpop.f32.mrb[0].mxu0
  %v153 = vadd.f32 0.0, %v152
  %v154 = vpop.f32.mrb[0].mxu0
  %v155 = vadd.f32 0.0, %v154
  %156 = vdwg.mxu0
  %v157 = vadd.f32 %v27, %v139
  %v158 = vadd.f32 %v28, %v141
  %v159 = vadd.f32 %v29, %v143
  %v160 = vadd.f32 %v30, %v145
  %v161 = vadd.f32 %v31, %v149
  %v162 = vadd.f32 %v32, %v151
  %v163 = vadd.f32 %v33, %v153
  %v164 = vadd.f32 %v34, %v155
  %165 = vst [vmem:[#allocation2] sm:$0xff] %v157
  %166 = vst [vmem:[#allocation2 + $0x8] sm:$0xff] %v158
  %167 = vst [vmem:[#allocation2 + $0x10] sm:$0xff] %v159
  %168 = vst [vmem:[#allocation2 + $0x18] sm:$0xff] %v160
  %169 = vst [vmem:[#allocation2 + $0x20] sm:$0xff] %v161
  %170 = vst [vmem:[#allocation2 + $0x28] sm:$0xff] %v162
  %171 = vst [vmem:[#allocation2 + $0x30] sm:$0xff] %v163
  %172 = vst [vmem:[#allocation2 + $0x38] sm:$0xff] %v164
  // Predicated region
  $region18: #{forward.1} parent=0 // pred_check
    %p173 = pneg %p15
  $region19: #{forward.1} parent=0 // pred_check_branch
    %175 = sbr.rel (%p173) target = $region21
  $region20: #{forward.1} parent=0 // pred_region
    %v176 = vld [vmem:[#allocation2] sm:$0xff]
    %v177 = vld [vmem:[#allocation2 + $0x8] sm:$0xff]
    %v178 = vld [vmem:[#allocation2 + $0x10] sm:$0xff]
    %v179 = vld [vmem:[#allocation2 + $0x18] sm:$0xff]
    %v180 = vld [vmem:[#allocation2 + $0x20] sm:$0xff]
    %v181 = vld [vmem:[#allocation2 + $0x28] sm:$0xff]
    %v182 = vld [vmem:[#allocation2 + $0x30] sm:$0xff]
    %v183 = vld [vmem:[#allocation2 + $0x38] sm:$0xff]
    %v184 = vld [vmem:[%s2] sm:$0x3]
    %v186 = vlaneseq
    %v187 = vshrl.u32 %v186, 7
    %v188 = vsub.s32 0, %v187
    %v189 = vrot.slane %v184, %v188
    %v190 = vlaneseq
    %v191 = vshrl.u32 %v190, 7
    %v192 = vsub.s32 1, %v191
    %v193 = vrot.slane %v184, %v192
    %v196 = vadd.f32 %v176, %v189
    %v197 = vadd.f32 %v177, %v193
    %v198 = vadd.f32 %v178, %v189
    %v199 = vadd.f32 %v179, %v193
    %v200 = vadd.f32 %v180, %v189
    %v201 = vadd.f32 %v181, %v193
    %v202 = vadd.f32 %v182, %v189
    %v203 = vadd.f32 %v183, %v193
    %vm204 = vcmp.gt.f32.partialorder %v196, 0.0
    %vm205 = vcmp.gt.f32.partialorder %v197, 0.0
    %vm206 = vcmp.gt.f32.partialorder %v198, 0.0
    %vm207 = vcmp.gt.f32.partialorder %v199, 0.0
    %vm208 = vcmp.gt.f32.partialorder %v200, 0.0
    %vm209 = vcmp.gt.f32.partialorder %v201, 0.0
    %vm210 = vcmp.gt.f32.partialorder %v202, 0.0
    %vm211 = vcmp.gt.f32.partialorder %v203, 0.0
    %v212 = vmin.f32 %v196, 0.0
    %v213 = vmin.f32 %v197, 0.0
    %v214 = vmin.f32 %v198, 0.0
    %v215 = vmin.f32 %v199, 0.0
    %v216 = vmin.f32 %v200, 0.0
    %v217 = vmin.f32 %v201, 0.0
    %v218 = vmin.f32 %v202, 0.0
    %v219 = vmin.f32 %v203, 0.0
    %v220 = vmul.f32 %v212, 1.442695
    %v221 = vpow.pop %v220
    %v222 = vmul.f32 %v213, 1.442695
    %v223 = vpow.pop %v222
    %v224 = vmul.f32 %v214, 1.442695
    %v225 = vpow.pop %v224
    %v226 = vmul.f32 %v215, 1.442695
    %v227 = vpow.pop %v226
    %v228 = vmul.f32 %v216, 1.442695
    %v229 = vpow.pop %v228
    %v230 = vmul.f32 %v217, 1.442695
    %v231 = vpow.pop %v230
    %v232 = vmul.f32 %v218, 1.442695
    %v233 = vpow.pop %v232
    %v234 = vmul.f32 %v219, 1.442695
    %v235 = vpow.pop %v234
    %v236 = vsub.f32 %v221, 1.0
    %v237 = vsub.f32 %v223, 1.0
    %v238 = vsub.f32 %v225, 1.0
    %v239 = vsub.f32 %v227, 1.0
    %v240 = vsub.f32 %v229, 1.0
    %v241 = vsub.f32 %v231, 1.0
    %v242 = vsub.f32 %v233, 1.0
    %v243 = vsub.f32 %v235, 1.0
    %v244 = vsel %vm204, %v196, %v236
    %v245 = vsel %vm205, %v197, %v237
    %v246 = vsel %vm206, %v198, %v238
    %v247 = vsel %vm207, %v199, %v239
    %v248 = vsel %vm208, %v200, %v240
    %v249 = vsel %vm209, %v201, %v241
    %v250 = vsel %vm210, %v202, %v242
    %v251 = vsel %vm211, %v203, %v243
    %v252 = vpack.c.bf16 %v246, %v244
    %v253 = vpack.c.bf16 %v247, %v245
    %v254 = vpack.c.bf16 %v250, %v248
    %v255 = vpack.c.bf16 %v251, %v249
    %v260 = vunpack.c.l.b16 %v252
    %v261 = vunpack.c.l.b16 %v253
    %v262 = vunpack.c.h.b16 %v252
    %v263 = vunpack.c.h.b16 %v253
    %v264 = vunpack.c.l.b16 %v254
    %v265 = vunpack.c.l.b16 %v255
    %v266 = vunpack.c.h.b16 %v254
    %v267 = vunpack.c.h.b16 %v255
    %v268 = vpack.c.b16 %v261, %v260
    %v269 = vpack.c.b16 %v263, %v262
    %v270 = vpack.c.b16 %v265, %v264
    %v271 = vpack.c.b16 %v267, %v266
    %276 = vst [vmem:[%s3] sm:$0xff] %v268
    %277 = vst [vmem:[%s3 + $0x8] sm:$0xff] %v269
    %278 = vst [vmem:[%s3 + $0x10] sm:$0xff] %v270
    %279 = vst [vmem:[%s3 + $0x18] sm:$0xff] %v271
  $region21: #{forward.1} parent=0 // pred_fallthru
    _
  // Predicated region
  $region22: #{forward.1} parent=0 // pred_check
    _
  $region23: #{forward.1} parent=0 // pred_check_branch
    %281 = sbr.rel (0) target = $region25
  $region24: #{forward.1} parent=0 // pred_region
    _
  $region25: #{forward.1} parent=0 // pred_fallthru
    _
  // Predicated region
  $region26: #{forward.1} parent=0 // pred_check
    _
  $region27: #{forward.1} parent=0 // pred_check_branch
    %283 = sbr.rel (0) target = $region29
  $region28: #{forward.1} parent=0 // pred_region
    _
  $region29: #{forward.1} parent=0 // pred_fallthru
    _

</llo_original>
